<compile_context>
chip_gen: v5e
topology: v5e:2x2
jax: 0.10.0
libtpu: 0.0.40
codegen_flags: <defaults>
</compile_context>

<pallas_src>
import functools
import math

import jax
import jax.numpy as jnp
from jax.experimental import pallas as pl
from jax.experimental.pallas import tpu as pltpu


# ----------------------------------------------------------------------------
# Kernel 1: fused Q/K/V projection   y[n] = x[n] @ w[n] + b[n]   (n = q,k,v)
# ----------------------------------------------------------------------------
def _qkv_proj_kernel(x_ref, w_ref, b_ref, o_ref):
    o_ref[0] = (
        jnp.dot(x_ref[0], w_ref[0], preferred_element_type=jnp.float32)
        + b_ref[0]
    )


def qkv_projection_pallas(x_all, w_all, b_all):
    """x_all: (3, M, D). w_all: (3, D, D) pre-transposed to (in, out). b_all: (3, 1, D)."""
    _, M, D = x_all.shape
    return pl.pallas_call(
        _qkv_proj_kernel,
        out_shape=jax.ShapeDtypeStruct((3, M, D), jnp.float32),
        grid=(3,),
        in_specs=[
            pl.BlockSpec((1, M, D), lambda n: (n, 0, 0)),
            pl.BlockSpec((1, D, D), lambda n: (n, 0, 0)),
            pl.BlockSpec((1, 1, D), lambda n: (n, 0, 0)),
        ],
        out_specs=pl.BlockSpec((1, M, D), lambda n: (n, 0, 0)),
        compiler_params=pltpu.CompilerParams(dimension_semantics=("parallel",)),
    )(x_all, w_all, b_all)


# ----------------------------------------------------------------------------
# Kernel 2: head-batched attention.  One grid step = all h heads of one batch.
#           softmax(Q K^T / sqrt(d_k)) V   with batched einsums (no explicit .T)
# ----------------------------------------------------------------------------
def _attention_kernel(q_ref, k_ref, v_ref, o_ref, *, scale):
    # Scale Q (S*d_k elems) instead of the scores (S*S elems): fewer vmuls
    # whenever S > d_k, identical math to within f32 rounding.
    q = q_ref[...] * scale                           # (h, S, d_k)
    k = k_ref[...]
    v = v_ref[...]
    # Contract last dims directly (no materialized transpose of K).
    s = jnp.einsum("hqd,hkd->hqk", q, k, preferred_element_type=jnp.float32)
    s = s - jnp.max(s, axis=-1, keepdims=True)       # numerically-stable softmax
    e = jnp.exp(s)
    # exact reciprocal (approx=True would be EUP-cheaper but we keep 1e-5 accuracy)
    inv = pl.reciprocal(jnp.sum(e, axis=-1, keepdims=True), approx=False)
    o_ref[...] = jnp.einsum("hqk,hkd->hqd", e * inv, v,
                            preferred_element_type=jnp.float32)


def attention_pallas(qh, kh, vh, h, d_k):
    """qh/kh/vh: (B*h, S, d_k) f32 -> (B*h, S, d_k)."""
    BH, S, Dk = qh.shape
    B = BH // h
    kern = functools.partial(_attention_kernel, scale=1.0 / math.sqrt(d_k))
    spec = pl.BlockSpec((h, S, Dk), lambda b: (b, 0, 0))
    return pl.pallas_call(
        kern,
        out_shape=jax.ShapeDtypeStruct((BH, S, Dk), jnp.float32),
        grid=(B,),
        in_specs=[spec, spec, spec],
        out_specs=pl.BlockSpec((h, S, Dk), lambda b: (b, 0, 0)),
        compiler_params=pltpu.CompilerParams(dimension_semantics=("parallel",)),
    )(qh, kh, vh)


# ----------------------------------------------------------------------------
# Kernel 3: tiled linear  y = x @ W^T + b  (reusable at realistic sizes)
# ----------------------------------------------------------------------------
def _linear_kernel(x_ref, w_ref, b_ref, o_ref, acc_ref):
    @pl.when(pl.program_id(2) == 0)
    def _init():
        acc_ref[...] = jnp.zeros_like(acc_ref)

    acc_ref[...] += jnp.dot(x_ref[...], w_ref[...],
                            preferred_element_type=jnp.float32)

    @pl.when(pl.program_id(2) == pl.num_programs(2) - 1)
    def _finalize():
        o_ref[...] = acc_ref[...] + b_ref[...]


def _pick_tile(dim, preferred):
    """Largest tile <= preferred that divides dim (multiple of 8 sublanes),
    falling back to the full dim (always a legal block)."""
    t = min(preferred, dim)
    while t > 8:
        if dim % t == 0:
            return t
        t //= 2
    return 8 if dim % 8 == 0 else dim


def linear_pallas(x2d, w, b, *, tm_pref=128, tn_pref=256, tk_pref=256):
    """x2d: (M, in) f32.  w: torch-style (out, in).  b: (out,)."""
    M, K = x2d.shape
    N = w.shape[0]
    w_t = w.T                       # (in, out)
    b2d = b.reshape(1, N)
    tm = _pick_tile(M, tm_pref)
    tn = _pick_tile(N, tn_pref)
    tk = _pick_tile(K, tk_pref)
    grid = (M // tm, N // tn, K // tk)
    return pl.pallas_call(
        _linear_kernel,
        out_shape=jax.ShapeDtypeStruct((M, N), jnp.float32),
        grid=grid,
        in_specs=[
            pl.BlockSpec((tm, tk), lambda i, j, k: (i, k)),
            pl.BlockSpec((tk, tn), lambda i, j, k: (k, j)),
            pl.BlockSpec((1, tn), lambda i, j, k: (0, j)),
        ],
        out_specs=pl.BlockSpec((tm, tn), lambda i, j, k: (i, j)),
        scratch_shapes=[pltpu.VMEM((tm, tn), jnp.float32)],
        compiler_params=pltpu.CompilerParams(
            dimension_semantics=("parallel", "parallel", "arbitrary")),
    )(x2d, w_t, b2d)


# ----------------------------------------------------------------------------
# MultiHeadAttention forward (mirrors the PyTorch module exactly)
# ----------------------------------------------------------------------------
@functools.partial(jax.jit, static_argnames=("h",))
def multi_head_attention(params, query, key, value, *, h):
    # TODO(synk): mask path not exercised by the reference script (mask=None in
    #             the driver); masked_fill branch therefore not implemented here.
    B, S, D = query.shape
    d_k = D // h
    M = B * S

    # --- fused QKV projection: 1 launch instead of 3 ------------------------
    x_all = jnp.stack([query.reshape(M, D), key.reshape(M, D), value.reshape(M, D)])
    w_all = jnp.stack([params["wq"].T, params["wk"].T, params["wv"].T])   # (3, D, D)
    b_all = jnp.stack([params["bq"], params["bk"], params["bv"]]).reshape(3, 1, D)
    qkv = qkv_projection_pallas(x_all, w_all, b_all)                      # (3, M, D)

    # PyTorch `.view(batch, h, -1, d_k)` (note: NO transpose) is a pure
    # row-major reshape; done at the XLA level (free under jit) so no
    # in-kernel relayout is needed.
    qh = qkv[0].reshape(B * h, S, d_k)
    kh = qkv[1].reshape(B * h, S, d_k)
    vh = qkv[2].reshape(B * h, S, d_k)

    # --- attention: all heads of a batch element per grid step --------------
    attn = attention_pallas(qh, kh, vh, h, d_k)                           # (B*h, S, d_k)

    # `.view(batch, -1, d_model)` then the output Linear (tiled matmul kernel).
    out2d = attn.reshape(M, D)
    out = linear_pallas(out2d, params["wo"], params["bo"])                # (M, D)
    # TODO(synk): nn.Dropout(p=0.1) treated as identity (eval mode); training
    #             dropout RNG cannot match torch bit-for-bit anyway.
    return out.reshape(B, S, D)


# ----------------------------------------------------------------------------
# Pure-JAX reference (same math, no Pallas) for correctness checking
# ----------------------------------------------------------------------------
def multi_head_attention_ref(params, query, key, value, h):
    B, S, D = query.shape
    d_k = D // h

    def lin(x, w, b):
        return x @ w.T + b

    q = lin(query, params["wq"], params["bq"]).reshape(B, h, -1, d_k)
    k = lin(key,   params["wk"], params["bk"]).reshape(B, h, -1, d_k)
    v = lin(value, params["wv"], params["bv"]).reshape(B, h, -1, d_k)
    s = jnp.einsum("bhqd,bhkd->bhqk", q, k) / math.sqrt(d_k)
    p = jax.nn.softmax(s, axis=-1)
    o = jnp.einsum("bhqk,bhkd->bhqd", p, v).reshape(B, -1, D)
    return lin(o, params["wo"], params["bo"])


# ----------------------------------------------------------------------------
# Deterministic parameter init + driver
# ----------------------------------------------------------------------------
def init_params(key, d_model):
    ks = jax.random.split(key, 8)
    scale = 1.0 / math.sqrt(d_model)

    def w(k):  # torch Linear weight shape: (out_features, in_features)
        return jax.random.uniform(k, (d_model, d_model), jnp.float32, -scale, scale)

    def b(k):
        return jax.random.uniform(k, (d_model,), jnp.float32, -scale, scale)

    return {
        "wq": w(ks[0]), "bq": b(ks[1]),
        "wk": w(ks[2]), "bk": b(ks[3]),
        "wv": w(ks[4]), "bv": b(ks[5]),
        "wo": w(ks[6]), "bo": b(ks[7]),
    }


if __name__ == "__main__":
    B, S, d_model, h = 2, 8, 32, 4

    root = jax.random.PRNGKey(0)
    kp, kq, kk, kv = jax.random.split(root, 4)

    params = init_params(kp, d_model)
    query = jax.random.normal(kq, (B, S, d_model), jnp.float32)
    key_  = jax.random.normal(kk, (B, S, d_model), jnp.float32)
    value = jax.random.normal(kv, (B, S, d_model), jnp.float32)

    out = multi_head_attention(params, query, key_, value, h=h)
    out = jax.block_until_ready(out)

    ref = jax.block_until_ready(multi_head_attention_ref(params, query, key_, value, h))

    assert out.shape == (B, S, d_model)
    assert jnp.allclose(out, ref, rtol=1e-5, atol=2e-5), "mismatch vs reference"
    print("KERNEL_OK")
</pallas_src>

<mosaic_0001>
module attributes {stable_mosaic.version = 11 : i64} {
  func.func @_qkv_proj_kernel(%arg0: i32, %arg1: memref<1x16x32xf32, #tpu.memory_space<vmem>>, %arg2: memref<1x32x32xf32, #tpu.memory_space<vmem>>, %arg3: memref<1x1x32xf32, #tpu.memory_space<vmem>>, %arg4: memref<1x16x32xf32, #tpu.memory_space<vmem>>) attributes {dimension_semantics = [#tpu.dimension_semantics<parallel>], iteration_bounds = array<i64: 3>, scalar_prefetch = 0 : i64, scratch_operands = 0 : i64, tpu.core_type = #tpu.core_type<tc>, window_params = [{transform_indices = @transform_0, window_bounds = array<i64: 1, 16, 32>}, {transform_indices = @transform_1, window_bounds = array<i64: 1, 32, 32>}, {transform_indices = @transform_2, window_bounds = array<i64: 1, 1, 32>}, {transform_indices = @transform_3, window_bounds = array<i64: 1, 16, 32>}]} {
    %c0 = arith.constant 0 : index
    %c0_0 = arith.constant 0 : index
    %c0_1 = arith.constant 0 : index
    %0 = vector.load %arg1[%c0, %c0_0, %c0_1] : memref<1x16x32xf32, #tpu.memory_space<vmem>>, vector<1x16x32xf32>
    %1 = vector.shape_cast %0 : vector<1x16x32xf32> to vector<16x32xf32>
    %c0_2 = arith.constant 0 : index
    %c0_3 = arith.constant 0 : index
    %c0_4 = arith.constant 0 : index
    %2 = vector.load %arg2[%c0_2, %c0_3, %c0_4] : memref<1x32x32xf32, #tpu.memory_space<vmem>>, vector<1x32x32xf32>
    %3 = vector.shape_cast %2 : vector<1x32x32xf32> to vector<32x32xf32>
    %cst = arith.constant dense<0.000000e+00> : vector<16x32xf32>
    %4 = tpu.matmul %1, %3, %cst {dimension_numbers = #tpu.dot_dimension_numbers<[1], [0], [0], [1], [0, 0, 1, 1], [], []>} : vector<16x32xf32>, vector<32x32xf32>, vector<16x32xf32> -> vector<16x32xf32>
    %c0_5 = arith.constant 0 : index
    %c0_6 = arith.constant 0 : index
    %c0_7 = arith.constant 0 : index
    %5 = vector.load %arg3[%c0_5, %c0_6, %c0_7] : memref<1x1x32xf32, #tpu.memory_space<vmem>>, vector<1x1x32xf32>
    %6 = vector.shape_cast %5 : vector<1x1x32xf32> to vector<1x32xf32>
    %7 = vector.broadcast %6 : vector<1x32xf32> to vector<16x32xf32>
    %8 = arith.addf %4, %7 : vector<16x32xf32>
    %c0_8 = arith.constant 0 : index
    %c0_9 = arith.constant 0 : index
    %c0_10 = arith.constant 0 : index
    %9 = vector.load %arg4[%c0_8, %c0_9, %c0_10] : memref<1x16x32xf32, #tpu.memory_space<vmem>>, vector<1x16x32xf32>
    %10 = vector.shape_cast %9 : vector<1x16x32xf32> to vector<16x32xf32>
    %11 = vector.shape_cast %8 : vector<16x32xf32> to vector<1x16x32xf32>
    tpu.vector_store %arg4[%c0_8, %c0_9, %c0_10], %11 {strides = array<i32>} : memref<1x16x32xf32, #tpu.memory_space<vmem>>, vector<1x16x32xf32>,
    return
  }
  func.func @transform_0(%arg0: i32) -> (i32, i32, i32) {
    %c0_i32 = arith.constant 0 : i32
    %c0_i32_0 = arith.constant 0 : i32
    %c0_i32_1 = arith.constant 0 : i32
    return %arg0, %c0_i32, %c0_i32_0 : i32, i32, i32
  }
  func.func @transform_1(%arg0: i32) -> (i32, i32, i32) {
    %c0_i32 = arith.constant 0 : i32
    %c0_i32_0 = arith.constant 0 : i32
    %c0_i32_1 = arith.constant 0 : i32
    return %arg0, %c0_i32, %c0_i32_0 : i32, i32, i32
  }
  func.func @transform_2(%arg0: i32) -> (i32, i32, i32) {
    %c0_i32 = arith.constant 0 : i32
    %c0_i32_0 = arith.constant 0 : i32
    %c0_i32_1 = arith.constant 0 : i32
    return %arg0, %c0_i32, %c0_i32_0 : i32, i32, i32
  }
  func.func @transform_3(%arg0: i32) -> (i32, i32, i32) {
    %c0_i32 = arith.constant 0 : i32
    %c0_i32_0 = arith.constant 0 : i32
    %c0_i32_1 = arith.constant 0 : i32
    return %arg0, %c0_i32, %c0_i32_0 : i32, i32, i32
  }
}

module attributes {stable_mosaic.version = 11 : i64} {
  func.func @_attention_kernel(%arg0: i32, %arg1: memref<4x8x8xf32, #tpu.memory_space<vmem>>, %arg2: memref<4x8x8xf32, #tpu.memory_space<vmem>>, %arg3: memref<4x8x8xf32, #tpu.memory_space<vmem>>, %arg4: memref<4x8x8xf32, #tpu.memory_space<vmem>>) attributes {dimension_semantics = [#tpu.dimension_semantics<parallel>], iteration_bounds = array<i64: 2>, scalar_prefetch = 0 : i64, scratch_operands = 0 : i64, tpu.core_type = #tpu.core_type<tc>, window_params = [{transform_indices = @transform_0, window_bounds = array<i64: 4, 8, 8>}, {transform_indices = @transform_1, window_bounds = array<i64: 4, 8, 8>}, {transform_indices = @transform_2, window_bounds = array<i64: 4, 8, 8>}, {transform_indices = @transform_3, window_bounds = array<i64: 4, 8, 8>}]} {
    %c0 = arith.constant 0 : index
    %c0_0 = arith.constant 0 : index
    %c0_1 = arith.constant 0 : index
    %0 = vector.load %arg1[%c0, %c0_0, %c0_1] : memref<4x8x8xf32, #tpu.memory_space<vmem>>, vector<4x8x8xf32>
    %cst = arith.constant 0.353553385 : f32
    %1 = vector.broadcast %cst : f32 to vector<4x8x8xf32>
    %2 = arith.mulf %0, %1 : vector<4x8x8xf32>
    %c0_2 = arith.constant 0 : index
    %c0_3 = arith.constant 0 : index
    %c0_4 = arith.constant 0 : index
    %3 = vector.load %arg2[%c0_2, %c0_3, %c0_4] : memref<4x8x8xf32, #tpu.memory_space<vmem>>, vector<4x8x8xf32>
    %c0_5 = arith.constant 0 : index
    %c0_6 = arith.constant 0 : index
    %c0_7 = arith.constant 0 : index
    %4 = vector.load %arg3[%c0_5, %c0_6, %c0_7] : memref<4x8x8xf32, #tpu.memory_space<vmem>>, vector<4x8x8xf32>
    "tpu.trace_start"() <{level = 10 : i32, message = "hqd,hkd->hqk"}> : () -> ()
    %cst_8 = arith.constant dense<0.000000e+00> : vector<4x8x8xf32>
    %5 = tpu.matmul %2, %3, %cst_8 {dimension_numbers = #tpu.dot_dimension_numbers<[2], [2], [1], [1], [0, 0, 0, 1, 1, 1], [0], [0]>} : vector<4x8x8xf32>, vector<4x8x8xf32>, vector<4x8x8xf32> -> vector<4x8x8xf32>
    "tpu.trace_stop"() : () -> ()
    %cst_9 = arith.constant dense<0xFF800000> : vector<4x8xf32>
    %6 = vector.multi_reduction <maximumf>, %5, %cst_9 [2] : vector<4x8x8xf32> to vector<4x8xf32>
    %7 = vector.shape_cast %6 : vector<4x8xf32> to vector<4x8x1xf32>
    %8 = vector.broadcast %7 : vector<4x8x1xf32> to vector<4x8x8xf32>
    %9 = arith.subf %5, %8 : vector<4x8x8xf32>
    %10 = math.exp %9 : vector<4x8x8xf32>
    %cst_10 = arith.constant dense<0.000000e+00> : vector<4x8xf32>
    %11 = vector.multi_reduction <add>, %10, %cst_10 [2] : vector<4x8x8xf32> to vector<4x8xf32>
    %12 = vector.shape_cast %11 : vector<4x8xf32> to vector<4x8x1xf32>
    %13 = tpu.reciprocal %12 : vector<4x8x1xf32> -> vector<4x8x1xf32>
    %14 = vector.broadcast %13 : vector<4x8x1xf32> to vector<4x8x8xf32>
    %15 = arith.mulf %10, %14 : vector<4x8x8xf32>
    "tpu.trace_start"() <{level = 10 : i32, message = "hqk,hkd->hqd"}> : () -> ()
    %cst_11 = arith.constant dense<0.000000e+00> : vector<4x8x8xf32>
    %16 = tpu.matmul %15, %4, %cst_11 {dimension_numbers = #tpu.dot_dimension_numbers<[2], [1], [1], [2], [0, 0, 0, 1, 1, 2], [0], [0]>} : vector<4x8x8xf32>, vector<4x8x8xf32>, vector<4x8x8xf32> -> vector<4x8x8xf32>
    "tpu.trace_stop"() : () -> ()
    %c0_12 = arith.constant 0 : index
    %c0_13 = arith.constant 0 : index
    %c0_14 = arith.constant 0 : index
    %17 = vector.load %arg4[%c0_12, %c0_13, %c0_14] : memref<4x8x8xf32, #tpu.memory_space<vmem>>, vector<4x8x8xf32>
    tpu.vector_store %arg4[%c0_12, %c0_13, %c0_14], %16 {strides = array<i32>} : memref<4x8x8xf32, #tpu.memory_space<vmem>>, vector<4x8x8xf32>,
    return
  }
  func.func @transform_0(%arg0: i32) -> (i32, i32, i32) {
    %c0_i32 = arith.constant 0 : i32
    %c0_i32_0 = arith.constant 0 : i32
    %c0_i32_1 = arith.constant 0 : i32
    return %arg0, %c0_i32, %c0_i32_0 : i32, i32, i32
  }
  func.func @transform_1(%arg0: i32) -> (i32, i32, i32) {
    %c0_i32 = arith.constant 0 : i32
    %c0_i32_0 = arith.constant 0 : i32
    %c0_i32_1 = arith.constant 0 : i32
    return %arg0, %c0_i32, %c0_i32_0 : i32, i32, i32
  }
  func.func @transform_2(%arg0: i32) -> (i32, i32, i32) {
    %c0_i32 = arith.constant 0 : i32
    %c0_i32_0 = arith.constant 0 : i32
    %c0_i32_1 = arith.constant 0 : i32
    return %arg0, %c0_i32, %c0_i32_0 : i32, i32, i32
  }
  func.func @transform_3(%arg0: i32) -> (i32, i32, i32) {
    %c0_i32 = arith.constant 0 : i32
    %c0_i32_0 = arith.constant 0 : i32
    %c0_i32_1 = arith.constant 0 : i32
    return %arg0, %c0_i32, %c0_i32_0 : i32, i32, i32
  }
}

module attributes {stable_mosaic.version = 11 : i64} {
  func.func @_linear_kernel(%arg0: i32, %arg1: i32, %arg2: i32, %arg3: memref<16x32xf32, #tpu.memory_space<vmem>>, %arg4: memref<32x32xf32, #tpu.memory_space<vmem>>, %arg5: memref<1x32xf32, #tpu.memory_space<vmem>>, %arg6: memref<16x32xf32, #tpu.memory_space<vmem>>, %arg7: memref<16x32xf32, #tpu.memory_space<vmem>>) attributes {dimension_semantics = [#tpu.dimension_semantics<parallel>, #tpu.dimension_semantics<parallel>, #tpu.dimension_semantics<arbitrary>], iteration_bounds = array<i64: 1, 1, 1>, scalar_prefetch = 0 : i64, scratch_operands = 1 : i64, tpu.core_type = #tpu.core_type<tc>, window_params = [{transform_indices = @transform_0, window_bounds = array<i64: 16, 32>}, {transform_indices = @transform_1, window_bounds = array<i64: 32, 32>}, {transform_indices = @transform_2, window_bounds = array<i64: 1, 32>}, {transform_indices = @transform_3, window_bounds = array<i64: 16, 32>}]} {
    %c0_i32 = arith.constant 0 : i32
    %0 = arith.cmpi eq, %arg2, %c0_i32 : i32
    %1 = arith.extui %0 : i1 to i32
    %c0_i32_0 = arith.constant 0 : i32
    %2 = arith.cmpi ne, %1, %c0_i32_0 : i32
    scf.if %2 {
      %cst_10 = arith.constant 0.000000e+00 : f32
      %12 = vector.broadcast %cst_10 : f32 to vector<16x32xf32>
      %c0_11 = arith.constant 0 : index
      %c0_12 = arith.constant 0 : index
      %13 = vector.load %arg7[%c0_11, %c0_12] : memref<16x32xf32, #tpu.memory_space<vmem>>, vector<16x32xf32>
      tpu.vector_store %arg7[%c0_11, %c0_12], %12 {strides = array<i32>} : memref<16x32xf32, #tpu.memory_space<vmem>>, vector<16x32xf32>,
    } else {
    }
    %c0 = arith.constant 0 : index
    %c0_1 = arith.constant 0 : index
    %3 = vector.load %arg7[%c0, %c0_1] : memref<16x32xf32, #tpu.memory_space<vmem>>, vector<16x32xf32>
    %c0_2 = arith.constant 0 : index
    %c0_3 = arith.constant 0 : index
    %4 = vector.load %arg3[%c0_2, %c0_3] : memref<16x32xf32, #tpu.memory_space<vmem>>, vector<16x32xf32>
    %c0_4 = arith.constant 0 : index
    %c0_5 = arith.constant 0 : index
    %5 = vector.load %arg4[%c0_4, %c0_5] : memref<32x32xf32, #tpu.memory_space<vmem>>, vector<32x32xf32>
    %cst = arith.constant dense<0.000000e+00> : vector<16x32xf32>
    %6 = tpu.matmul %4, %5, %cst {dimension_numbers = #tpu.dot_dimension_numbers<[1], [0], [0], [1], [0, 0, 1, 1], [], []>} : vector<16x32xf32>, vector<32x32xf32>, vector<16x32xf32> -> vector<16x32xf32>
    %7 = arith.addf %3, %6 : vector<16x32xf32>
    %c0_6 = arith.constant 0 : index
    %c0_7 = arith.constant 0 : index
    %8 = vector.load %arg7[%c0_6, %c0_7] : memref<16x32xf32, #tpu.memory_space<vmem>>, vector<16x32xf32>
    tpu.vector_store %arg7[%c0_6, %c0_7], %7 {strides = array<i32>} : memref<16x32xf32, #tpu.memory_space<vmem>>, vector<16x32xf32>,
    %c0_i32_8 = arith.constant 0 : i32
    %9 = arith.cmpi eq, %arg2, %c0_i32_8 : i32
    %10 = arith.extui %9 : i1 to i32
    %c0_i32_9 = arith.constant 0 : i32
    %11 = arith.cmpi ne, %10, %c0_i32_9 : i32
    scf.if %11 {
      %c0_10 = arith.constant 0 : index
      %c0_11 = arith.constant 0 : index
      %12 = vector.load %arg7[%c0_10, %c0_11] : memref<16x32xf32, #tpu.memory_space<vmem>>, vector<16x32xf32>
      %c0_12 = arith.constant 0 : index
      %c0_13 = arith.constant 0 : index
      %13 = vector.load %arg5[%c0_12, %c0_13] : memref<1x32xf32, #tpu.memory_space<vmem>>, vector<1x32xf32>
      %14 = vector.broadcast %13 : vector<1x32xf32> to vector<16x32xf32>
      %15 = arith.addf %12, %14 : vector<16x32xf32>
      %c0_14 = arith.constant 0 : index
      %c0_15 = arith.constant 0 : index
      %16 = vector.load %arg6[%c0_14, %c0_15] : memref<16x32xf32, #tpu.memory_space<vmem>>, vector<16x32xf32>
      tpu.vector_store %arg6[%c0_14, %c0_15], %15 {strides = array<i32>} : memref<16x32xf32, #tpu.memory_space<vmem>>, vector<16x32xf32>,
    } else {
    }
    return
  }
  func.func @transform_0(%arg0: i32, %arg1: i32, %arg2: i32) -> (i32, i32) {
    %c0_i32 = arith.constant 0 : i32
    return %arg0, %arg2 : i32, i32
  }
  func.func @transform_1(%arg0: i32, %arg1: i32, %arg2: i32) -> (i32, i32) {
    %c0_i32 = arith.constant 0 : i32
    return %arg2, %arg1 : i32, i32
  }
  func.func @transform_2(%arg0: i32, %arg1: i32, %arg2: i32) -> (i32, i32) {
    %c0_i32 = arith.constant 0 : i32
    %c0_i32_0 = arith.constant 0 : i32
    return %c0_i32, %arg1 : i32, i32
  }
  func.func @transform_3(%arg0: i32, %arg1: i32, %arg2: i32) -> (i32, i32) {
    %c0_i32 = arith.constant 0 : i32
    return %arg0, %arg1 : i32, i32
  }
}

</mosaic_0001>

<llo_original>
// kernel: squeeze.3
$region0: #{squeeze.3}
  %s0 = inlined_call_operand.vmem [shape: f32[1,16,32], index: 0, kind: input, shape index: {}]
  %s1 = inlined_call_operand.vmem [shape: f32[8,8,8], index: 1, kind: output, shape index: {}]
  %v2 = vld [vmem:[%s0] sm:$0xff]
  %vm3 = vcmask 64512
  %4 = vst.msk [vmem:[%s1] ss:$4 sm:$0xff] %vm3, %v2
  %s5 = scalar_lea.vmem %s0, 8
  %v6 = vld [vmem:[%s5] sm:$0xff]
  %vm7 = vcmask 64512
  %s8 = scalar_lea.vmem %s1, 32
  %9 = vst.msk [vmem:[%s8] ss:$4 sm:$0xff] %vm7, %v6
  %v10 = vld [vmem:[%s0] sm:$0xff]
  %11 = vrot.lane.b32.xlu0 %v10, 120
  %v12 = vpop.permute.xlu0 %11
  %vm13 = vcmask 64512
  %s14 = scalar_lea.vmem %s1, 1
  %15 = vst.msk [vmem:[%s14] ss:$4 sm:$0xff] %vm13, %v12
  %s16 = scalar_lea.vmem %s0, 8
  %v17 = vld [vmem:[%s16] sm:$0xff]
  %18 = vrot.lane.b32.xlu0 %v17, 120
  %v19 = vpop.permute.xlu0 %18
  %vm20 = vcmask 64512
  %s21 = scalar_lea.vmem %s1, 33
  %22 = vst.msk [vmem:[%s21] ss:$4 sm:$0xff] %vm20, %v19
  %v23 = vld [vmem:[%s0] sm:$0xff]
  %24 = vrot.lane.b32.xlu0 %v23, 112
  %v25 = vpop.permute.xlu0 %24
  %vm26 = vcmask 64512
  %s27 = scalar_lea.vmem %s1, 2
  %28 = vst.msk [vmem:[%s27] ss:$4 sm:$0xff] %vm26, %v25
  %s29 = scalar_lea.vmem %s0, 8
  %v30 = vld [vmem:[%s29] sm:$0xff]
  %31 = vrot.lane.b32.xlu0 %v30, 112
  %v32 = vpop.permute.xlu0 %31
  %vm33 = vcmask 64512
  %s34 = scalar_lea.vmem %s1, 34
  %35 = vst.msk [vmem:[%s34] ss:$4 sm:$0xff] %vm33, %v32
  %v36 = vld [vmem:[%s0] sm:$0xff]
  %37 = vrot.lane.b32.xlu0 %v36, 104
  %v38 = vpop.permute.xlu0 %37
  %vm39 = vcmask 64512
  %s40 = scalar_lea.vmem %s1, 3
  %41 = vst.msk [vmem:[%s40] ss:$4 sm:$0xff] %vm39, %v38
  %s42 = scalar_lea.vmem %s0, 8
  %v43 = vld [vmem:[%s42] sm:$0xff]
  %44 = vrot.lane.b32.xlu0 %v43, 104
  %v45 = vpop.permute.xlu0 %44
  %vm46 = vcmask 64512
  %s47 = scalar_lea.vmem %s1, 35
  %48 = vst.msk [vmem:[%s47] ss:$4 sm:$0xff] %vm46, %v45

// kernel: multi_head_attention.3
$region0: #{multi_head_attention.3}
  #allocation0 [shape = 'u32[]', space=smem, size = 0x4, offset = 0x4, fixed_abs, tag = 'smem constant byte address 0x4 - core index']
  #allocation1 [shape = 'u32[72,128]{1,0:T(1,128)}', space=vmem, size = 0x9000, scoped, tag = 'internal scratch']
  %s0 = inlined_call_operand.vmem [shape: f32[3,16,32], index: 0, kind: input, shape index: {}]
  %s1 = inlined_call_operand.vmem [shape: f32[3,32,32], index: 1, kind: input, shape index: {}]
  %s2 = inlined_call_operand.vmem [shape: f32[3,1,32], index: 2, kind: input, shape index: {}]
  %s3 = inlined_call_operand.vmem [shape: f32[3,16,32], index: 3, kind: output, shape index: {}]
  %s4 = sld [smem:[#allocation0]]
  $region45: #{multi_head_attention.3} parent=0
    _
  %s6 = ssub.s32 1, %s4
  %s7 = scalar_select 0, %s6, %s4
  loop: start=0, step=1, limit=5
  $region2: #{multi_head_attention.3} parent=0 // loop_pre_header
    _
  $region3: #{multi_head_attention.3} parent=0 // loop_header
    %s9 = sphi 0, %s13
    %p10 = scmp.ge.s32.totalorder %s9, 5
    %s19 = sphi 0, %s21
    %s22 = sphi 0, %s19
    %s23 = sphi 0, %s22
    %s39 = sphi 0, %s23
    %s45 = sphi 0, %s47
    %s48 = sphi 0, %s45
    %s49 = sphi 0, %s48
    %s65 = sphi 0, %s49
    %s71 = sphi 0, %s73
    %s74 = sphi 0, %s71
    %s75 = sphi 0, %s74
    %s91 = sphi 0, %s75
    %s97 = sphi 0, %s99
    %s100 = sphi 0, %s97
    %s101 = sphi 0, %s100
    %s117 = sphi 0, %s101
  $region4: #{multi_head_attention.3} parent=0 // loop_header_branch
    %12 = sbr.rel (%p10) target = $region8
  $region5: #{multi_head_attention.3} parent=0 // loop_body
    %s14 = ssub.s32 %s9, 1
    %s15 = ssub.s32 %s9, 2
    %s16 = sadd.s32 %s9, 1
    %s17 = ssub.s32 %s9, %s16
    %p18 = scmp.eq.s32.totalorder %s17, 0
    %s20 = sadd.s32 %s19, 1
    %s21 = scalar_select %p18, %s19, %s20
    %p24 = pneg %p18
    %p25 = scmp.eq.s32.totalorder %s9, 2
    %p26 = por %p24, %p25
    %p27 = scmp.ne.s32.totalorder %s19, %s22
    %p28 = scmp.eq.s32.totalorder %s9, 0
    %p29 = por %p27, %p28
    %p30 = scmp.ne.s32.totalorder %s19, %s22
    %p31 = scmp.eq.s32.totalorder %s14, 2
    %p32 = por %p30, %p31
    %p33 = scmp.ne.s32.totalorder %s22, %s23
    %p34 = scmp.eq.s32.totalorder %s14, 0
    %p35 = por %p33, %p34
    %p36 = scmp.ne.s32.totalorder %s22, %s23
    %p37 = scmp.eq.s32.totalorder %s15, 2
    %p38 = por %p36, %p37
    %p40 = scmp.ne.s32.totalorder %s23, %s39
    %p41 = scmp.eq.s32.totalorder %s15, 0
    %p42 = por %p40, %p41
    %s43 = ssub.s32 %s9, %s16
    %p44 = scmp.eq.s32.totalorder %s43, 0
    %s46 = sadd.s32 %s45, 1
    %s47 = scalar_select %p44, %s45, %s46
    %p50 = pneg %p44
    %p51 = scmp.eq.s32.totalorder %s9, 2
    %p52 = por %p50, %p51
    %p53 = scmp.ne.s32.totalorder %s45, %s48
    %p54 = scmp.eq.s32.totalorder %s9, 0
    %p55 = por %p53, %p54
    %p56 = scmp.ne.s32.totalorder %s45, %s48
    %p57 = scmp.eq.s32.totalorder %s14, 2
    %p58 = por %p56, %p57
    %p59 = scmp.ne.s32.totalorder %s48, %s49
    %p60 = scmp.eq.s32.totalorder %s14, 0
    %p61 = por %p59, %p60
    %p62 = scmp.ne.s32.totalorder %s48, %s49
    %p63 = scmp.eq.s32.totalorder %s15, 2
    %p64 = por %p62, %p63
    %p66 = scmp.ne.s32.totalorder %s49, %s65
    %p67 = scmp.eq.s32.totalorder %s15, 0
    %p68 = por %p66, %p67
    %s69 = ssub.s32 %s9, %s16
    %p70 = scmp.eq.s32.totalorder %s69, 0
    %s72 = sadd.s32 %s71, 1
    %s73 = scalar_select %p70, %s71, %s72
    %p76 = pneg %p70
    %p77 = scmp.eq.s32.totalorder %s9, 2
    %p78 = por %p76, %p77
    %p79 = scmp.ne.s32.totalorder %s71, %s74
    %p80 = scmp.eq.s32.totalorder %s9, 0
    %p81 = por %p79, %p80
    %p82 = scmp.ne.s32.totalorder %s71, %s74
    %p83 = scmp.eq.s32.totalorder %s14, 2
    %p84 = por %p82, %p83
    %p85 = scmp.ne.s32.totalorder %s74, %s75
    %p86 = scmp.eq.s32.totalorder %s14, 0
    %p87 = por %p85, %p86
    %p88 = scmp.ne.s32.totalorder %s74, %s75
    %p89 = scmp.eq.s32.totalorder %s15, 2
    %p90 = por %p88, %p89
    %p92 = scmp.ne.s32.totalorder %s75, %s91
    %p93 = scmp.eq.s32.totalorder %s15, 0
    %p94 = por %p92, %p93
    %s95 = ssub.s32 %s9, %s16
    %p96 = scmp.eq.s32.totalorder %s95, 0
    %s98 = sadd.s32 %s97, 1
    %s99 = scalar_select %p96, %s97, %s98
    %p102 = pneg %p96
    %p103 = scmp.eq.s32.totalorder %s9, 2
    %p104 = por %p102, %p103
    %p105 = scmp.ne.s32.totalorder %s97, %s100
    %p106 = scmp.eq.s32.totalorder %s9, 0
    %p107 = por %p105, %p106
    %p108 = scmp.ne.s32.totalorder %s97, %s100
    %p109 = scmp.eq.s32.totalorder %s14, 2
    %p110 = por %p108, %p109
    %p111 = scmp.ne.s32.totalorder %s100, %s101
    %p112 = scmp.eq.s32.totalorder %s14, 0
    %p113 = por %p111, %p112
    %p114 = scmp.ne.s32.totalorder %s100, %s101
    %p115 = scmp.eq.s32.totalorder %s15, 2
    %p116 = por %p114, %p115
    %p118 = scmp.ne.s32.totalorder %s101, %s117
    %p119 = scmp.eq.s32.totalorder %s15, 0
    %p120 = por %p118, %p119
    %p121 = scmp.le.s32.totalorder 1, %s9
    %p122 = scmp.lt.s32.totalorder %s9, 4
    %p123 = pnand %p121, %p122
    %p124 = pneg %p123
    // Predicated region
    $region9: #{multi_head_attention.3} parent=5 // pred_check
      _
    $region10: #{multi_head_attention.3} parent=5 // pred_check_branch
      %126 = sbr.rel (%p123) target = $region12
    $region11: #{multi_head_attention.3} parent=5 // pred_region
      %s127 = ssub.s32 %s9, 1
    $region12: #{multi_head_attention.3} parent=5 // pred_fallthru
      _
    %p128 = scmp.lt.s32.totalorder %s9, 3
    // Predicated region
    $region13: #{multi_head_attention.3} parent=5 // pred_check
      %p129 = pneg %p128
    $region14: #{multi_head_attention.3} parent=5 // pred_check_branch
      %131 = sbr.rel (%p129) target = $region16
    $region15: #{multi_head_attention.3} parent=5 // pred_region
      // Predicated region
      $region17: #{multi_head_attention.3} parent=15 // pred_check
        %p132 = pneg %p29
      $region18: #{multi_head_attention.3} parent=15 // pred_check_branch
        %134 = sbr.rel (%p132) target = $region20
      $region19: #{multi_head_attention.3} parent=15 // pred_region
        %p135 = scmp.lt.s32.totalorder %s9, 2
        %s136 = scalar_select %p135, %s9, 2
        %s137 = smul.addr %s136, 2
        %s138 = smul.addr %s137, 8
        %s139 = scalar_lea.vmem %s0, %s138
      $region20: #{multi_head_attention.3} parent=15 // pred_fallthru
        _
      // Predicated region
      $region21: #{multi_head_attention.3} parent=15 // pred_check
        %p140 = pneg %p55
      $region22: #{multi_head_attention.3} parent=15 // pred_check_branch
        %142 = sbr.rel (%p140) target = $region24
      $region23: #{multi_head_attention.3} parent=15 // pred_region
        %p143 = scmp.lt.s32.totalorder %s9, 2
        %s144 = scalar_select %p143, %s9, 2
        %s145 = smul.addr %s144, 4
        %s146 = smul.addr %s145, 8
        %s147 = scalar_lea.vmem %s1, %s146
      $region24: #{multi_head_attention.3} parent=15 // pred_fallthru
        _
      // Predicated region
      $region25: #{multi_head_attention.3} parent=15 // pred_check
        %p148 = pneg %p81
      $region26: #{multi_head_attention.3} parent=15 // pred_check_branch
        %150 = sbr.rel (%p148) target = $region28
      $region27: #{multi_head_attention.3} parent=15 // pred_region
        %p151 = scmp.lt.s32.totalorder %s9, 2
        %s152 = scalar_select %p151, %s9, 2
        %s153 = scalar_lea.vmem %s2, %s152
      $region28: #{multi_head_attention.3} parent=15 // pred_fallthru
        _
    $region16: #{multi_head_attention.3} parent=5 // pred_fallthru
      _
    %p154 = scmp.le.s32.totalorder 1, %s9
    %p155 = scmp.lt.s32.totalorder %s9, 4
    %p156 = pnand %p154, %p155
    %p157 = pneg %p156
    // Predicated region
    $region29: #{multi_head_attention.3} parent=5 // pred_check
      _
    $region30: #{multi_head_attention.3} parent=5 // pred_check_branch
      %159 = sbr.rel (%p156) target = $region32
    $region31: #{multi_head_attention.3} parent=5 // pred_region
      %s160 = ssub.s32 %s9, 1
      %p161 = scmp.lt.s32.totalorder %s14, 2
      %s162 = scalar_select %p161, %s14, 2
      %s163 = smul.addr %s162, 2
      %s164 = smul.addr %s163, 8
      %s165 = scalar_lea.vmem %s0, %s164
      %p166 = pneg %p35
      %p167 = pneg %p32
      %p168 = scmp.lt.s32.totalorder %s14, 2
      %s169 = scalar_select %p168, %s14, 2
      %s170 = smul.addr %s169, 4
      %s171 = smul.addr %s170, 8
      %s172 = scalar_lea.vmem %s1, %s171
      %p173 = pneg %p61
      %p174 = pneg %p58
      %p175 = scmp.lt.s32.totalorder %s14, 2
      %s176 = scalar_select %p175, %s14, 2
      %s177 = scalar_lea.vmem %s2, %s176
      %p178 = pneg %p87
      %p179 = pneg %p84
      %p180 = pneg %p113
      %p181 = pneg %p110
      %p182 = scmp.lt.s32.totalorder %s14, 2
      %s183 = scalar_select %p182, %s14, 2
      %s184 = smul.addr %s183, 2
      %s185 = smul.addr %s184, 8
      %s186 = scalar_lea.vmem %s3, %s185
      %p187 = scmp.lt.s32.totalorder %s14, 2
      %s188 = scalar_select %p187, %s14, 2
      %s189 = smul.addr %s188, 2
      %s190 = smul.addr %s189, 8
      %s191 = scalar_lea.vmem %s0, %s190
      %p192 = scmp.lt.s32.totalorder %s14, 2
      %s193 = scalar_select %p192, %s14, 2
      %s194 = smul.addr %s193, 4
      %s195 = smul.addr %s194, 8
      %s196 = scalar_lea.vmem %s1, %s195
      %p197 = scmp.lt.s32.totalorder %s14, 2
      %s198 = scalar_select %p197, %s14, 2
      %s199 = scalar_lea.vmem %s2, %s198
      %p200 = scmp.lt.s32.totalorder %s14, 2
      %s201 = scalar_select %p200, %s14, 2
      %s202 = smul.addr %s201, 2
      %s203 = smul.addr %s202, 8
      %s204 = scalar_lea.vmem %s3, %s203
      %v205 = vld [vmem:[%s191] sm:$0xff]
      %v206 = vld [vmem:[%s191 + $0x8] sm:$0xff]
      %v207 = vld [vmem:[%s196] sm:$0xff]
      %v208 = vld [vmem:[%s196 + $0x8] sm:$0xff]
      %v209 = vld [vmem:[%s196 + $0x10] sm:$0xff]
      %v210 = vld [vmem:[%s196 + $0x18] sm:$0xff]
      %v211 = vld [vmem:[%s199] sm:$0x1]
      %v213 = vperm.slane %v211, 0
      %vm215 = vcmask 261120
      %v217 = vsel %vm215, %v205, 0
      %v220 = vsel %vm215, %v206, 0
      %222 = vmatpush.msra.mxu0 0.0
      %223 = vmatpush.msra.mxu0 0.0
      %224 = vmatpush.msra.mxu0 0.0
      %225 = vmatpush.msra.mxu0 0.0
      %226 = vmatpush.msra.mxu0 0.0
      %227 = vmatpush.msra.mxu0 0.0
      %228 = vmatpush.msra.mxu0 0.0
      %229 = vmatpush.msra.mxu0 0.0
      %230 = vmatpush.msra.mxu0 0.0
      %231 = vmatpush.msra.mxu0 0.0
      %232 = vmatpush.msra.mxu0 0.0
      %233 = vmatpush.msra.mxu0 0.0
      %234 = vmatpush.msra.mxu0 %v210
      %235 = vmatpush.msra.mxu0 %v209
      %236 = vmatpush.msra.mxu0 %v208
      %237 = vmatpush.msra.mxu0 %v207
      %238 = vmatmul.f32.gmra.mxu0 %v217
      %v239 = vpop.f32.mrf.mxu0
      %v240 = vadd.f32 %v213, %v239
      %241 = vmatmul.f32.gmra.mxu0 %v220
      %v242 = vpop.f32.mrf.mxu0
      %v243 = vadd.f32 %v213, %v242
      %244 = vdwg.mxu0
      %245 = vst.msk [vmem:[%s204] sm:$0xff] %vm215, %v240
      %246 = vst.msk [vmem:[%s204 + $0x8] sm:$0xff] %vm215, %v243
      %p247 = scmp.lt.s32.totalorder %s14, 2
      %s248 = scalar_select %p247, %s14, 2
      %s249 = smul.addr %s248, 2
      %s250 = smul.addr %s249, 8
      %s251 = scalar_lea.vmem %s3, %s250
      // Predicated region
      $region33: #{multi_head_attention.3} parent=31 // pred_check
        %p252 = pneg %p110
      $region34: #{multi_head_attention.3} parent=31 // pred_check_branch
        %254 = sbr.rel (%p252) target = $region36
      $region35: #{multi_head_attention.3} parent=31 // pred_region
        _
      $region36: #{multi_head_attention.3} parent=31 // pred_fallthru
        _
    $region32: #{multi_head_attention.3} parent=5 // pred_fallthru
      _
    %p255 = scmp.le.s32.totalorder 2, %s9
    // Predicated region
    $region37: #{multi_head_attention.3} parent=5 // pred_check
      %p256 = pneg %p255
    $region38: #{multi_head_attention.3} parent=5 // pred_check_branch
      %258 = sbr.rel (%p256) target = $region40
    $region39: #{multi_head_attention.3} parent=5 // pred_region
      %s259 = ssub.s32 %s9, 2
      // Predicated region
      $region41: #{multi_head_attention.3} parent=39 // pred_check
        %p260 = pneg %p116
      $region42: #{multi_head_attention.3} parent=39 // pred_check_branch
        %262 = sbr.rel (%p260) target = $region44
      $region43: #{multi_head_attention.3} parent=39 // pred_region
        %p263 = scmp.lt.s32.totalorder %s15, 2
        %s264 = scalar_select %p263, %s15, 2
        %s265 = smul.addr %s264, 2
        %s266 = smul.addr %s265, 8
        %s267 = scalar_lea.vmem %s3, %s266
      $region44: #{multi_head_attention.3} parent=39 // pred_fallthru
        _
    $region40: #{multi_head_attention.3} parent=5 // pred_fallthru
      _
  $region6: #{multi_head_attention.3} parent=0 // loop_footer
    %s13 = sadd.s32 1, %s9
  $region7: #{multi_head_attention.3} parent=0 // loop_footer_branch
    %8 = sbr.rel target = $region3
  $region8: #{multi_head_attention.3} parent=0 // loop_exit
    _

// kernel: multi_head_attention.5
$region0: #{multi_head_attention.5}
  #allocation0 [shape = 'u32[]', space=smem, size = 0x4, offset = 0x4, fixed_abs, tag = 'smem constant byte address 0x4 - core index']
  #allocation1 [shape = 'u32[72,128]{1,0:T(1,128)}', space=vmem, size = 0x9000, scoped, tag = 'internal scratch']
  #allocation2 [shape = 'f32[16,32]{1,0:T(8,128)}', space=vmem, size = 0x2000, scoped, tag = 'scratch operand']
  %s0 = inlined_call_operand.vmem [shape: f32[16,32], index: 0, kind: input, shape index: {}]
  %s1 = inlined_call_operand.vmem [shape: f32[32,32], index: 1, kind: input, shape index: {}]
  %s2 = inlined_call_operand.vmem [shape: f32[1,32], index: 2, kind: input, shape index: {}]
  %s3 = inlined_call_operand.hbm [shape: f32[16,32], index: 3, kind: output, shape index: {}]
  %s4 = sld [smem:[#allocation0]]
  $region30: #{multi_head_attention.5} parent=0
    _
  %s6 = ssub.s32 1, %s4
  %s7 = scalar_select 0, %s6, %s4
  $region1: #{multi_head_attention.5} parent=0
    #allocation3 [shape = 'u8[8192]{0}', space=vmem, size = 0x2000, scoped, tag = 'output window, operand 0, single buffered']
    #allocation4 [shape = 's32[1]{0}', space=sflag, size = 0x4, scoped, tag = 'scoped memory for multi_head_attention.5']
    %8 = vsyncpa [#allocation4], 0
    // Predicated region
    $region2: #{multi_head_attention.5} parent=1 // pred_check
      _
    $region3: #{multi_head_attention.5} parent=1 // pred_check_branch
      %10 = sbr.rel (0) target = $region5
    $region4: #{multi_head_attention.5} parent=1 // pred_region
      _
    $region5: #{multi_head_attention.5} parent=1 // pred_fallthru
      _
    // Predicated region
    $region6: #{multi_head_attention.5} parent=1 // pred_check
      _
    $region7: #{multi_head_attention.5} parent=1 // pred_check_branch
      %12 = sbr.rel (0) target = $region9
    $region8: #{multi_head_attention.5} parent=1 // pred_region
      _
    $region9: #{multi_head_attention.5} parent=1 // pred_fallthru
      _
    // Predicated region
    $region10: #{multi_head_attention.5} parent=1 // pred_check
      _
    $region11: #{multi_head_attention.5} parent=1 // pred_check_branch
      %14 = sbr.rel (0) target = $region13
    $region12: #{multi_head_attention.5} parent=1 // pred_region
      _
    $region13: #{multi_head_attention.5} parent=1 // pred_fallthru
      _
    %p15 = scmp.eq.s32.totalorder 0, 0
    // Predicated region
    $region14: #{multi_head_attention.5} parent=1 // pred_check
      %p16 = pneg %p15
    $region15: #{multi_head_attention.5} parent=1 // pred_check_branch
      %18 = sbr.rel (%p16) target = $region17
    $region16: #{multi_head_attention.5} parent=1 // pred_region
      %vm19 = vcmask 261120
      %20 = vst.msk [vmem:[#allocation2] sm:$0xff] %vm19, 0.0
      %21 = vst.msk [vmem:[#allocation2 + $0x8] sm:$0xff] %vm19, 0.0
    $region17: #{multi_head_attention.5} parent=1 // pred_fallthru
      _
    %v22 = vld [vmem:[#allocation2] sm:$0xff]
    %v23 = vld [vmem:[#allocation2 + $0x8] sm:$0xff]
    %v24 = vld [vmem:[%s0] sm:$0xff]
    %v25 = vld [vmem:[%s0 + $0x8] sm:$0xff]
    %v26 = vld [vmem:[%s1] sm:$0xff]
    %v27 = vld [vmem:[%s1 + $0x8] sm:$0xff]
    %v28 = vld [vmem:[%s1 + $0x10] sm:$0xff]
    %v29 = vld [vmem:[%s1 + $0x18] sm:$0xff]
    %vm30 = vcmask 261120
    %v32 = vsel %vm30, %v24, 0
    %v35 = vsel %vm30, %v25, 0
    %37 = vmatpush.msra.mxu0 0.0
    %38 = vmatpush.msra.mxu0 0.0
    %39 = vmatpush.msra.mxu0 0.0
    %40 = vmatpush.msra.mxu0 0.0
    %41 = vmatpush.msra.mxu0 0.0
    %42 = vmatpush.msra.mxu0 0.0
    %43 = vmatpush.msra.mxu0 0.0
    %44 = vmatpush.msra.mxu0 0.0
    %45 = vmatpush.msra.mxu0 0.0
    %46 = vmatpush.msra.mxu0 0.0
    %47 = vmatpush.msra.mxu0 0.0
    %48 = vmatpush.msra.mxu0 0.0
    %49 = vmatpush.msra.mxu0 %v29
    %50 = vmatpush.msra.mxu0 %v28
    %51 = vmatpush.msra.mxu0 %v27
    %52 = vmatpush.msra.mxu0 %v26
    %53 = vmatmul.f32.gmra.mxu0 %v32
    %v54 = vpop.f32.mrf.mxu0
    %v55 = vadd.f32 0.0, %v54
    %56 = vmatmul.f32.gmra.mxu0 %v35
    %v57 = vpop.f32.mrf.mxu0
    %v58 = vadd.f32 0.0, %v57
    %59 = vdwg.mxu0
    %v60 = vadd.f32 %v22, %v55
    %v61 = vadd.f32 %v23, %v58
    %62 = vst.msk [vmem:[#allocation2] sm:$0xff] %vm30, %v60
    %63 = vst.msk [vmem:[#allocation2 + $0x8] sm:$0xff] %vm30, %v61
    // Predicated region
    $region18: #{multi_head_attention.5} parent=1 // pred_check
      %p64 = pneg %p15
    $region19: #{multi_head_attention.5} parent=1 // pred_check_branch
      %66 = sbr.rel (%p64) target = $region21
    $region20: #{multi_head_attention.5} parent=1 // pred_region
      %v67 = vld [vmem:[#allocation2] sm:$0xff]
      %v68 = vld [vmem:[#allocation2 + $0x8] sm:$0xff]
      %v69 = vld [vmem:[%s2] sm:$0x1]
      %v71 = vperm.slane %v69, 0
      %v73 = vadd.f32 %v67, %v71
      %v74 = vadd.f32 %v68, %v71
      %75 = vst.msk [vmem:[#allocation3] sm:$0xff] %vm30, %v73
      %76 = vst.msk [vmem:[#allocation3 + $0x8] sm:$0xff] %vm30, %v74
    $region21: #{multi_head_attention.5} parent=1 // pred_fallthru
      _
    // Predicated region
    $region22: #{multi_head_attention.5} parent=1 // pred_check
      _
    $region23: #{multi_head_attention.5} parent=1 // pred_check_branch
      %78 = sbr.rel (0) target = $region25
    $region24: #{multi_head_attention.5} parent=1 // pred_region
      %80 = vsyncadd [#allocation4], 0
      %s81 = sshll.u32 [#allocation3], 4
      %s82 = int_to_ptr.vmem [resolvable:$true] %s81
      %s83 = sshll.u32 %s3, 4
      %s84 = int_to_ptr.hbm [resolvable:$true] %s83
      %89 = dma.vmem_to_hbm [thread:$0]  %s82, 256, %s84, [#allocation4], 128, 128, 8
    $region25: #{multi_head_attention.5} parent=1 // pred_fallthru
      _
    // Predicated region
    $region26: #{multi_head_attention.5} parent=1 // pred_check
      _
    $region27: #{multi_head_attention.5} parent=1 // pred_check_branch
      %91 = sbr.rel (0) target = $region29
    $region28: #{multi_head_attention.5} parent=1 // pred_region
      %93 = dma.done [#allocation4], 256
    $region29: #{multi_head_attention.5} parent=1 // pred_fallthru
      _
    %94 = vsyncpa [#allocation4], 1

// kernel: multi_head_attention.4
$region0: #{multi_head_attention.4}
  #allocation0 [shape = 'u32[]', space=smem, size = 0x4, offset = 0x4, fixed_abs, tag = 'smem constant byte address 0x4 - core index']
  #allocation1 [shape = 'u32[72,128]{1,0:T(1,128)}', space=vmem, size = 0x9000, scoped, tag = 'internal scratch']
  %s0 = inlined_call_operand.vmem [shape: f32[8,8,8], index: 0, kind: input, shape index: {}]
  %s1 = inlined_call_operand.vmem [shape: f32[8,8,8], index: 1, kind: input, shape index: {}]
  %s2 = inlined_call_operand.vmem [shape: f32[8,8,8], index: 2, kind: input, shape index: {}]
  %s3 = inlined_call_operand.vmem [shape: f32[8,8,8], index: 3, kind: output, shape index: {}]
  %s4 = sld [smem:[#allocation0]]
  $region45: #{multi_head_attention.4} parent=0
    _
  %s6 = ssub.s32 1, %s4
  %s7 = scalar_select 0, %s6, %s4
  loop: start=0, step=1, limit=4
  $region2: #{multi_head_attention.4} parent=0 // loop_pre_header
    _
  $region3: #{multi_head_attention.4} parent=0 // loop_header
    %s9 = sphi 0, %s13
    %p10 = scmp.ge.s32.totalorder %s9, 4
    %s19 = sphi 0, %s21
    %s22 = sphi 0, %s19
    %s23 = sphi 0, %s22
    %s39 = sphi 0, %s23
    %s45 = sphi 0, %s47
    %s48 = sphi 0, %s45
    %s49 = sphi 0, %s48
    %s65 = sphi 0, %s49
    %s71 = sphi 0, %s73
    %s74 = sphi 0, %s71
    %s75 = sphi 0, %s74
    %s91 = sphi 0, %s75
    %s97 = sphi 0, %s99
    %s100 = sphi 0, %s97
    %s101 = sphi 0, %s100
    %s117 = sphi 0, %s101
  $region4: #{multi_head_attention.4} parent=0 // loop_header_branch
    %12 = sbr.rel (%p10) target = $region8
  $region5: #{multi_head_attention.4} parent=0 // loop_body
    %s14 = ssub.s32 %s9, 1
    %s15 = ssub.s32 %s9, 2
    %s16 = sadd.s32 %s9, 1
    %s17 = ssub.s32 %s9, %s16
    %p18 = scmp.eq.s32.totalorder %s17, 0
    %s20 = sadd.s32 %s19, 1
    %s21 = scalar_select %p18, %s19, %s20
    %p24 = pneg %p18
    %p25 = scmp.eq.s32.totalorder %s9, 1
    %p26 = por %p24, %p25
    %p27 = scmp.ne.s32.totalorder %s19, %s22
    %p28 = scmp.eq.s32.totalorder %s9, 0
    %p29 = por %p27, %p28
    %p30 = scmp.ne.s32.totalorder %s19, %s22
    %p31 = scmp.eq.s32.totalorder %s14, 1
    %p32 = por %p30, %p31
    %p33 = scmp.ne.s32.totalorder %s22, %s23
    %p34 = scmp.eq.s32.totalorder %s14, 0
    %p35 = por %p33, %p34
    %p36 = scmp.ne.s32.totalorder %s22, %s23
    %p37 = scmp.eq.s32.totalorder %s15, 1
    %p38 = por %p36, %p37
    %p40 = scmp.ne.s32.totalorder %s23, %s39
    %p41 = scmp.eq.s32.totalorder %s15, 0
    %p42 = por %p40, %p41
    %s43 = ssub.s32 %s9, %s16
    %p44 = scmp.eq.s32.totalorder %s43, 0
    %s46 = sadd.s32 %s45, 1
    %s47 = scalar_select %p44, %s45, %s46
    %p50 = pneg %p44
    %p51 = scmp.eq.s32.totalorder %s9, 1
    %p52 = por %p50, %p51
    %p53 = scmp.ne.s32.totalorder %s45, %s48
    %p54 = scmp.eq.s32.totalorder %s9, 0
    %p55 = por %p53, %p54
    %p56 = scmp.ne.s32.totalorder %s45, %s48
    %p57 = scmp.eq.s32.totalorder %s14, 1
    %p58 = por %p56, %p57
    %p59 = scmp.ne.s32.totalorder %s48, %s49
    %p60 = scmp.eq.s32.totalorder %s14, 0
    %p61 = por %p59, %p60
    %p62 = scmp.ne.s32.totalorder %s48, %s49
    %p63 = scmp.eq.s32.totalorder %s15, 1
    %p64 = por %p62, %p63
    %p66 = scmp.ne.s32.totalorder %s49, %s65
    %p67 = scmp.eq.s32.totalorder %s15, 0
    %p68 = por %p66, %p67
    %s69 = ssub.s32 %s9, %s16
    %p70 = scmp.eq.s32.totalorder %s69, 0
    %s72 = sadd.s32 %s71, 1
    %s73 = scalar_select %p70, %s71, %s72
    %p76 = pneg %p70
    %p77 = scmp.eq.s32.totalorder %s9, 1
    %p78 = por %p76, %p77
    %p79 = scmp.ne.s32.totalorder %s71, %s74
    %p80 = scmp.eq.s32.totalorder %s9, 0
    %p81 = por %p79, %p80
    %p82 = scmp.ne.s32.totalorder %s71, %s74
    %p83 = scmp.eq.s32.totalorder %s14, 1
    %p84 = por %p82, %p83
    %p85 = scmp.ne.s32.totalorder %s74, %s75
    %p86 = scmp.eq.s32.totalorder %s14, 0
    %p87 = por %p85, %p86
    %p88 = scmp.ne.s32.totalorder %s74, %s75
    %p89 = scmp.eq.s32.totalorder %s15, 1
    %p90 = por %p88, %p89
    %p92 = scmp.ne.s32.totalorder %s75, %s91
    %p93 = scmp.eq.s32.totalorder %s15, 0
    %p94 = por %p92, %p93
    %s95 = ssub.s32 %s9, %s16
    %p96 = scmp.eq.s32.totalorder %s95, 0
    %s98 = sadd.s32 %s97, 1
    %s99 = scalar_select %p96, %s97, %s98
    %p102 = pneg %p96
    %p103 = scmp.eq.s32.totalorder %s9, 1
    %p104 = por %p102, %p103
    %p105 = scmp.ne.s32.totalorder %s97, %s100
    %p106 = scmp.eq.s32.totalorder %s9, 0
    %p107 = por %p105, %p106
    %p108 = scmp.ne.s32.totalorder %s97, %s100
    %p109 = scmp.eq.s32.totalorder %s14, 1
    %p110 = por %p108, %p109
    %p111 = scmp.ne.s32.totalorder %s100, %s101
    %p112 = scmp.eq.s32.totalorder %s14, 0
    %p113 = por %p111, %p112
    %p114 = scmp.ne.s32.totalorder %s100, %s101
    %p115 = scmp.eq.s32.totalorder %s15, 1
    %p116 = por %p114, %p115
    %p118 = scmp.ne.s32.totalorder %s101, %s117
    %p119 = scmp.eq.s32.totalorder %s15, 0
    %p120 = por %p118, %p119
    %p121 = scmp.le.s32.totalorder 1, %s9
    %p122 = scmp.lt.s32.totalorder %s9, 3
    %p123 = pnand %p121, %p122
    %p124 = pneg %p123
    // Predicated region
    $region9: #{multi_head_attention.4} parent=5 // pred_check
      _
    $region10: #{multi_head_attention.4} parent=5 // pred_check_branch
      %126 = sbr.rel (%p123) target = $region12
    $region11: #{multi_head_attention.4} parent=5 // pred_region
      %s127 = ssub.s32 %s9, 1
    $region12: #{multi_head_attention.4} parent=5 // pred_fallthru
      _
    %p128 = scmp.lt.s32.totalorder %s9, 2
    // Predicated region
    $region13: #{multi_head_attention.4} parent=5 // pred_check
      %p129 = pneg %p128
    $region14: #{multi_head_attention.4} parent=5 // pred_check_branch
      %131 = sbr.rel (%p129) target = $region16
    $region15: #{multi_head_attention.4} parent=5 // pred_region
      // Predicated region
      $region17: #{multi_head_attention.4} parent=15 // pred_check
        %p132 = pneg %p29
      $region18: #{multi_head_attention.4} parent=15 // pred_check_branch
        %134 = sbr.rel (%p132) target = $region20
      $region19: #{multi_head_attention.4} parent=15 // pred_region
        %s135 = smul.u32 4, %s9
        %p136 = scmp.lt.s32.totalorder %s135, 7
        %s137 = scalar_select %p136, %s135, 7
        %s138 = smul.addr %s137, 8
        %s139 = scalar_lea.vmem %s0, %s138
        %s140 = smul.u32 4, %s9
      $region20: #{multi_head_attention.4} parent=15 // pred_fallthru
        _
      // Predicated region
      $region21: #{multi_head_attention.4} parent=15 // pred_check
        %p141 = pneg %p55
      $region22: #{multi_head_attention.4} parent=15 // pred_check_branch
        %143 = sbr.rel (%p141) target = $region24
      $region23: #{multi_head_attention.4} parent=15 // pred_region
        %s144 = smul.u32 4, %s9
        %p145 = scmp.lt.s32.totalorder %s144, 7
        %s146 = scalar_select %p145, %s144, 7
        %s147 = smul.addr %s146, 8
        %s148 = scalar_lea.vmem %s1, %s147
        %s149 = smul.u32 4, %s9
      $region24: #{multi_head_attention.4} parent=15 // pred_fallthru
        _
      // Predicated region
      $region25: #{multi_head_attention.4} parent=15 // pred_check
        %p150 = pneg %p81
      $region26: #{multi_head_attention.4} parent=15 // pred_check_branch
        %152 = sbr.rel (%p150) target = $region28
      $region27: #{multi_head_attention.4} parent=15 // pred_region
        %s153 = smul.u32 4, %s9
        %p154 = scmp.lt.s32.totalorder %s153, 7
        %s155 = scalar_select %p154, %s153, 7
        %s156 = smul.addr %s155, 8
        %s157 = scalar_lea.vmem %s2, %s156
        %s158 = smul.u32 4, %s9
      $region28: #{multi_head_attention.4} parent=15 // pred_fallthru
        _
    $region16: #{multi_head_attention.4} parent=5 // pred_fallthru
      _
    %p159 = scmp.le.s32.totalorder 1, %s9
    %p160 = scmp.lt.s32.totalorder %s9, 3
    %p161 = pnand %p159, %p160
    %p162 = pneg %p161
    // Predicated region
    $region29: #{multi_head_attention.4} parent=5 // pred_check
      _
    $region30: #{multi_head_attention.4} parent=5 // pred_check_branch
      %164 = sbr.rel (%p161) target = $region32
    $region31: #{multi_head_attention.4} parent=5 // pred_region
      %s165 = ssub.s32 %s9, 1
      %s166 = smul.u32 4, %s14
      %p167 = scmp.lt.s32.totalorder %s166, 7
      %s168 = scalar_select %p167, %s166, 7
      %s169 = smul.addr %s168, 8
      %s170 = scalar_lea.vmem %s0, %s169
      %p171 = pneg %p35
      %p172 = pneg %p32
      %s173 = smul.u32 4, %s14
      %p174 = scmp.lt.s32.totalorder %s173, 7
      %s175 = scalar_select %p174, %s173, 7
      %s176 = smul.addr %s175, 8
      %s177 = scalar_lea.vmem %s1, %s176
      %p178 = pneg %p61
      %p179 = pneg %p58
      %s180 = smul.u32 4, %s14
      %p181 = scmp.lt.s32.totalorder %s180, 7
      %s182 = scalar_select %p181, %s180, 7
      %s183 = smul.addr %s182, 8
      %s184 = scalar_lea.vmem %s2, %s183
      %p185 = pneg %p87
      %p186 = pneg %p84
      %p187 = pneg %p113
      %p188 = pneg %p110
      %s189 = smul.u32 4, %s14
      %p190 = scmp.lt.s32.totalorder %s189, 7
      %s191 = scalar_select %p190, %s189, 7
      %s192 = smul.addr %s191, 8
      %s193 = scalar_lea.vmem %s3, %s192
      %s194 = smul.u32 4, %s14
      %p195 = scmp.lt.s32.totalorder %s194, 7
      %s196 = scalar_select %p195, %s194, 7
      %s197 = smul.addr %s196, 8
      %s198 = scalar_lea.vmem %s0, %s197
      %s199 = smul.u32 4, %s14
      %s200 = smul.u32 4, %s14
      %p201 = scmp.lt.s32.totalorder %s200, 7
      %s202 = scalar_select %p201, %s200, 7
      %s203 = smul.addr %s202, 8
      %s204 = scalar_lea.vmem %s1, %s203
      %s205 = smul.u32 4, %s14
      %s206 = smul.u32 4, %s14
      %p207 = scmp.lt.s32.totalorder %s206, 7
      %s208 = scalar_select %p207, %s206, 7
      %s209 = smul.addr %s208, 8
      %s210 = scalar_lea.vmem %s2, %s209
      %s211 = smul.u32 4, %s14
      %s212 = smul.u32 4, %s14
      %p213 = scmp.lt.s32.totalorder %s212, 7
      %s214 = scalar_select %p213, %s212, 7
      %s215 = smul.addr %s214, 8
      %s216 = scalar_lea.vmem %s3, %s215
      %s217 = smul.u32 4, %s14
      %v218 = vld [vmem:[%s198] sm:$0xff]
      %v219 = vld [vmem:[%s198 + $0x8] sm:$0xff]
      %v220 = vld [vmem:[%s198 + $0x10] sm:$0xff]
      %v221 = vld [vmem:[%s198 + $0x18] sm:$0xff]
      %v222 = vmul.f32 %v218, 0.35355338
      %v223 = vmul.f32 %v219, 0.35355338
      %v224 = vmul.f32 %v220, 0.35355338
      %v225 = vmul.f32 %v221, 0.35355338
      %v226 = vld [vmem:[%s204] sm:$0xff]
      %v227 = vld [vmem:[%s204 + $0x8] sm:$0xff]
      %v228 = vld [vmem:[%s204 + $0x10] sm:$0xff]
      %v229 = vld [vmem:[%s204 + $0x18] sm:$0xff]
      %v230 = vld [vmem:[%s210] sm:$0xff]
      %v231 = vld [vmem:[%s210 + $0x8] sm:$0xff]
      %v232 = vld [vmem:[%s210 + $0x10] sm:$0xff]
      %v233 = vld [vmem:[%s210 + $0x18] sm:$0xff]
      %vm234 = vcmask 64512
      %v236 = vsel %vm234, %v222, 0
      %v239 = vsel %vm234, %v226, 0
      %241 = vmatpush.xpose.msra.mxu0 0.0
      %242 = vmatpush.xpose.msra.mxu0 0.0
      %243 = vmatpush.xpose.msra.mxu0 0.0
      %244 = vmatpush.xpose.msra.mxu0 0.0
      %245 = vmatpush.xpose.msra.mxu0 0.0
      %246 = vmatpush.xpose.msra.mxu0 0.0
      %247 = vmatpush.xpose.msra.mxu0 0.0
      %248 = vmatpush.xpose.msra.mxu0 0.0
      %249 = vmatpush.xpose.msra.mxu0 0.0
      %250 = vmatpush.xpose.msra.mxu0 0.0
      %251 = vmatpush.xpose.msra.mxu0 0.0
      %252 = vmatpush.xpose.msra.mxu0 0.0
      %253 = vmatpush.xpose.msra.mxu0 0.0
      %254 = vmatpush.xpose.msra.mxu0 0.0
      %255 = vmatpush.xpose.msra.mxu0 0.0
      %256 = vmatpush.xpose.msra.mxu0 %v239
      %257 = vmatmul.f32.gmra.mxu0 %v236
      %v258 = vpop.f32.mrf.mxu0
      %v259 = vadd.f32 0.0, %v258
      %260 = vdwg.mxu0
      %v262 = vsel %vm234, %v223, 0
      %v265 = vsel %vm234, %v227, 0
      %267 = vmatpush.xpose.msra.mxu0 0.0
      %268 = vmatpush.xpose.msra.mxu0 0.0
      %269 = vmatpush.xpose.msra.mxu0 0.0
      %270 = vmatpush.xpose.msra.mxu0 0.0
      %271 = vmatpush.xpose.msra.mxu0 0.0
      %272 = vmatpush.xpose.msra.mxu0 0.0
      %273 = vmatpush.xpose.msra.mxu0 0.0
      %274 = vmatpush.xpose.msra.mxu0 0.0
      %275 = vmatpush.xpose.msra.mxu0 0.0
      %276 = vmatpush.xpose.msra.mxu0 0.0
      %277 = vmatpush.xpose.msra.mxu0 0.0
      %278 = vmatpush.xpose.msra.mxu0 0.0
      %279 = vmatpush.xpose.msra.mxu0 0.0
      %280 = vmatpush.xpose.msra.mxu0 0.0
      %281 = vmatpush.xpose.msra.mxu0 0.0
      %282 = vmatpush.xpose.msra.mxu0 %v265
      %283 = vmatmul.f32.gmra.mxu0 %v262
      %v284 = vpop.f32.mrf.mxu0
      %v285 = vadd.f32 0.0, %v284
      %286 = vdwg.mxu0
      %v288 = vsel %vm234, %v224, 0
      %v291 = vsel %vm234, %v228, 0
      %293 = vmatpush.xpose.msra.mxu0 0.0
      %294 = vmatpush.xpose.msra.mxu0 0.0
      %295 = vmatpush.xpose.msra.mxu0 0.0
      %296 = vmatpush.xpose.msra.mxu0 0.0
      %297 = vmatpush.xpose.msra.mxu0 0.0
      %298 = vmatpush.xpose.msra.mxu0 0.0
      %299 = vmatpush.xpose.msra.mxu0 0.0
      %300 = vmatpush.xpose.msra.mxu0 0.0
      %301 = vmatpush.xpose.msra.mxu0 0.0
      %302 = vmatpush.xpose.msra.mxu0 0.0
      %303 = vmatpush.xpose.msra.mxu0 0.0
      %304 = vmatpush.xpose.msra.mxu0 0.0
      %305 = vmatpush.xpose.msra.mxu0 0.0
      %306 = vmatpush.xpose.msra.mxu0 0.0
      %307 = vmatpush.xpose.msra.mxu0 0.0
      %308 = vmatpush.xpose.msra.mxu0 %v291
      %309 = vmatmul.f32.gmra.mxu0 %v288
      %v310 = vpop.f32.mrf.mxu0
      %v311 = vadd.f32 0.0, %v310
      %312 = vdwg.mxu0
      %v314 = vsel %vm234, %v225, 0
      %v317 = vsel %vm234, %v229, 0
      %319 = vmatpush.xpose.msra.mxu0 0.0
      %320 = vmatpush.xpose.msra.mxu0 0.0
      %321 = vmatpush.xpose.msra.mxu0 0.0
      %322 = vmatpush.xpose.msra.mxu0 0.0
      %323 = vmatpush.xpose.msra.mxu0 0.0
      %324 = vmatpush.xpose.msra.mxu0 0.0
      %325 = vmatpush.xpose.msra.mxu0 0.0
      %326 = vmatpush.xpose.msra.mxu0 0.0
      %327 = vmatpush.xpose.msra.mxu0 0.0
      %328 = vmatpush.xpose.msra.mxu0 0.0
      %329 = vmatpush.xpose.msra.mxu0 0.0
      %330 = vmatpush.xpose.msra.mxu0 0.0
      %331 = vmatpush.xpose.msra.mxu0 0.0
      %332 = vmatpush.xpose.msra.mxu0 0.0
      %333 = vmatpush.xpose.msra.mxu0 0.0
      %334 = vmatpush.xpose.msra.mxu0 %v317
      %335 = vmatmul.f32.gmra.mxu0 %v314
      %v336 = vpop.f32.mrf.mxu0
      %v337 = vadd.f32 0.0, %v336
      %338 = vdwg.mxu0
      %v339 = vsel %vm234, %v259, -inf
      %340 = vmax.xlane.f32.xlu0 %v339
      %v341 = vpop.xlane.xlu0 %340
      %v342 = vsel %vm234, %v285, -inf
      %343 = vmax.xlane.f32.xlu0 %v342
      %v344 = vpop.xlane.xlu0 %343
      %v345 = vsel %vm234, %v311, -inf
      %346 = vmax.xlane.f32.xlu0 %v345
      %v347 = vpop.xlane.xlu0 %346
      %v348 = vsel %vm234, %v337, -inf
      %349 = vmax.xlane.f32.xlu0 %v348
      %v350 = vpop.xlane.xlu0 %349
      %v351 = vsub.f32 %v259, %v341
      %v352 = vsub.f32 %v285, %v344
      %v353 = vsub.f32 %v311, %v347
      %v354 = vsub.f32 %v337, %v350
      %v355 = vmul.f32 %v351, 1.442695
      %v356 = vpow.pop %v355
      %v357 = vmul.f32 %v352, 1.442695
      %v358 = vpow.pop %v357
      %v359 = vmul.f32 %v353, 1.442695
      %v360 = vpow.pop %v359
      %v361 = vmul.f32 %v354, 1.442695
      %v362 = vpow.pop %v361
      %v363 = vsel %vm234, %v356, 0.0
      %364 = vadd.xlane.f32.xlu0 %v363
      %v365 = vpop.xlane.xlu0 %364
      %v366 = vsel %vm234, %v358, 0.0
      %367 = vadd.xlane.f32.xlu0 %v366
      %v368 = vpop.xlane.xlu0 %367
      %v369 = vsel %vm234, %v360, 0.0
      %370 = vadd.xlane.f32.xlu0 %v369
      %v371 = vpop.xlane.xlu0 %370
      %v372 = vsel %vm234, %v362, 0.0
      %373 = vadd.xlane.f32.xlu0 %v372
      %v374 = vpop.xlane.xlu0 %373
      %v375 = vrcp.pop %v365
      %v376 = vmul.f32 %v365, %v375
      %v377 = vsub.f32 1.0, %v376
      %v378 = vmul.f32 %v375, %v377
      %v379 = vadd.f32 %v375, %v378
      %vm380 = vweird.f32 %v365
      %vm381 = vweird.f32 %v375
      %vm382 = vmor %vm380, %vm381
      %v383 = vsel %vm382, %v375, %v379
      %v384 = vand.u32 2147483647, %v365
      %vm385 = vcmp.eq.f32.partialorder %v384, 8.507059e+37
      %v386 = vand.u32 %v365, 2147483648
      %v387 = vor.u32 1.1754944e-38, %v386
      %v388 = vsel %vm385, %v387, %v383
      %v389 = vrcp.pop %v368
      %v390 = vmul.f32 %v368, %v389
      %v391 = vsub.f32 1.0, %v390
      %v392 = vmul.f32 %v389, %v391
      %v393 = vadd.f32 %v389, %v392
      %vm394 = vweird.f32 %v368
      %vm395 = vweird.f32 %v389
      %vm396 = vmor %vm394, %vm395
      %v397 = vsel %vm396, %v389, %v393
      %v398 = vand.u32 2147483647, %v368
      %vm399 = vcmp.eq.f32.partialorder %v398, 8.507059e+37
      %v400 = vand.u32 %v368, 2147483648
      %v401 = vor.u32 1.1754944e-38, %v400
      %v402 = vsel %vm399, %v401, %v397
      %v403 = vrcp.pop %v371
      %v404 = vmul.f32 %v371, %v403
      %v405 = vsub.f32 1.0, %v404
      %v406 = vmul.f32 %v403, %v405
      %v407 = vadd.f32 %v403, %v406
      %vm408 = vweird.f32 %v371
      %vm409 = vweird.f32 %v403
      %vm410 = vmor %vm408, %vm409
      %v411 = vsel %vm410, %v403, %v407
      %v412 = vand.u32 2147483647, %v371
      %vm413 = vcmp.eq.f32.partialorder %v412, 8.507059e+37
      %v414 = vand.u32 %v371, 2147483648
      %v415 = vor.u32 1.1754944e-38, %v414
      %v416 = vsel %vm413, %v415, %v411
      %v417 = vrcp.pop %v374
      %v418 = vmul.f32 %v374, %v417
      %v419 = vsub.f32 1.0, %v418
      %v420 = vmul.f32 %v417, %v419
      %v421 = vadd.f32 %v417, %v420
      %vm422 = vweird.f32 %v374
      %vm423 = vweird.f32 %v417
      %vm424 = vmor %vm422, %vm423
      %v425 = vsel %vm424, %v417, %v421
      %v426 = vand.u32 2147483647, %v374
      %vm427 = vcmp.eq.f32.partialorder %v426, 8.507059e+37
      %v428 = vand.u32 %v374, 2147483648
      %v429 = vor.u32 1.1754944e-38, %v428
      %v430 = vsel %vm427, %v429, %v425
      %v431 = vmul.f32 %v356, %v388
      %v432 = vmul.f32 %v358, %v402
      %v433 = vmul.f32 %v360, %v416
      %v434 = vmul.f32 %v362, %v430
      %v436 = vsel %vm234, %v431, 0
      %438 = vmatpush.msra.mxu0 0.0
      %439 = vmatpush.msra.mxu0 0.0
      %440 = vmatpush.msra.mxu0 0.0
      %441 = vmatpush.msra.mxu0 0.0
      %442 = vmatpush.msra.mxu0 0.0
      %443 = vmatpush.msra.mxu0 0.0
      %444 = vmatpush.msra.mxu0 0.0
      %445 = vmatpush.msra.mxu0 0.0
      %446 = vmatpush.msra.mxu0 0.0
      %447 = vmatpush.msra.mxu0 0.0
      %448 = vmatpush.msra.mxu0 0.0
      %449 = vmatpush.msra.mxu0 0.0
      %450 = vmatpush.msra.mxu0 0.0
      %451 = vmatpush.msra.mxu0 0.0
      %452 = vmatpush.msra.mxu0 0.0
      %453 = vmatpush.msra.mxu0 %v230
      %454 = vmatmul.f32.gmra.mxu0 %v436
      %v455 = vpop.f32.mrf.mxu0
      %v456 = vadd.f32 0.0, %v455
      %457 = vdwg.mxu0
      %v459 = vsel %vm234, %v432, 0
      %461 = vmatpush.msra.mxu0 0.0
      %462 = vmatpush.msra.mxu0 0.0
      %463 = vmatpush.msra.mxu0 0.0
      %464 = vmatpush.msra.mxu0 0.0
      %465 = vmatpush.msra.mxu0 0.0
      %466 = vmatpush.msra.mxu0 0.0
      %467 = vmatpush.msra.mxu0 0.0
      %468 = vmatpush.msra.mxu0 0.0
      %469 = vmatpush.msra.mxu0 0.0
      %470 = vmatpush.msra.mxu0 0.0
      %471 = vmatpush.msra.mxu0 0.0
      %472 = vmatpush.msra.mxu0 0.0
      %473 = vmatpush.msra.mxu0 0.0
      %474 = vmatpush.msra.mxu0 0.0
      %475 = vmatpush.msra.mxu0 0.0
      %476 = vmatpush.msra.mxu0 %v231
      %477 = vmatmul.f32.gmra.mxu0 %v459
      %v478 = vpop.f32.mrf.mxu0
      %v479 = vadd.f32 0.0, %v478
      %480 = vdwg.mxu0
      %v482 = vsel %vm234, %v433, 0
      %484 = vmatpush.msra.mxu0 0.0
      %485 = vmatpush.msra.mxu0 0.0
      %486 = vmatpush.msra.mxu0 0.0
      %487 = vmatpush.msra.mxu0 0.0
      %488 = vmatpush.msra.mxu0 0.0
      %489 = vmatpush.msra.mxu0 0.0
      %490 = vmatpush.msra.mxu0 0.0
      %491 = vmatpush.msra.mxu0 0.0
      %492 = vmatpush.msra.mxu0 0.0
      %493 = vmatpush.msra.mxu0 0.0
      %494 = vmatpush.msra.mxu0 0.0
      %495 = vmatpush.msra.mxu0 0.0
      %496 = vmatpush.msra.mxu0 0.0
      %497 = vmatpush.msra.mxu0 0.0
      %498 = vmatpush.msra.mxu0 0.0
      %499 = vmatpush.msra.mxu0 %v232
      %500 = vmatmul.f32.gmra.mxu0 %v482
      %v501 = vpop.f32.mrf.mxu0
      %v502 = vadd.f32 0.0, %v501
      %503 = vdwg.mxu0
      %v505 = vsel %vm234, %v434, 0
      %507 = vmatpush.msra.mxu0 0.0
      %508 = vmatpush.msra.mxu0 0.0
      %509 = vmatpush.msra.mxu0 0.0
      %510 = vmatpush.msra.mxu0 0.0
      %511 = vmatpush.msra.mxu0 0.0
      %512 = vmatpush.msra.mxu0 0.0
      %513 = vmatpush.msra.mxu0 0.0
      %514 = vmatpush.msra.mxu0 0.0
      %515 = vmatpush.msra.mxu0 0.0
      %516 = vmatpush.msra.mxu0 0.0
      %517 = vmatpush.msra.mxu0 0.0
      %518 = vmatpush.msra.mxu0 0.0
      %519 = vmatpush.msra.mxu0 0.0
      %520 = vmatpush.msra.mxu0 0.0
      %521 = vmatpush.msra.mxu0 0.0
      %522 = vmatpush.msra.mxu0 %v233
      %523 = vmatmul.f32.gmra.mxu0 %v505
      %v524 = vpop.f32.mrf.mxu0
      %v525 = vadd.f32 0.0, %v524
      %526 = vdwg.mxu0
      %527 = vst.msk [vmem:[%s216] sm:$0xff] %vm234, %v456
      %528 = vst.msk [vmem:[%s216 + $0x8] sm:$0xff] %vm234, %v479
      %529 = vst.msk [vmem:[%s216 + $0x10] sm:$0xff] %vm234, %v502
      %530 = vst.msk [vmem:[%s216 + $0x18] sm:$0xff] %vm234, %v525
      %s531 = smul.u32 4, %s14
      %p532 = scmp.lt.s32.totalorder %s531, 7
      %s533 = scalar_select %p532, %s531, 7
      %s534 = smul.addr %s533, 8
      %s535 = scalar_lea.vmem %s3, %s534
      // Predicated region
      $region33: #{multi_head_attention.4} parent=31 // pred_check
        %p536 = pneg %p110
      $region34: #{multi_head_attention.4} parent=31 // pred_check_branch
        %538 = sbr.rel (%p536) target = $region36
      $region35: #{multi_head_attention.4} parent=31 // pred_region
        %s539 = smul.u32 4, %s14
      $region36: #{multi_head_attention.4} parent=31 // pred_fallthru
        _
    $region32: #{multi_head_attention.4} parent=5 // pred_fallthru
      _
    %p540 = scmp.le.s32.totalorder 2, %s9
    // Predicated region
    $region37: #{multi_head_attention.4} parent=5 // pred_check
      %p541 = pneg %p540
    $region38: #{multi_head_attention.4} parent=5 // pred_check_branch
      %543 = sbr.rel (%p541) target = $region40
    $region39: #{multi_head_attention.4} parent=5 // pred_region
      %s544 = ssub.s32 %s9, 2
      // Predicated region
      $region41: #{multi_head_attention.4} parent=39 // pred_check
        %p545 = pneg %p116
      $region42: #{multi_head_attention.4} parent=39 // pred_check_branch
        %547 = sbr.rel (%p545) target = $region44
      $region43: #{multi_head_attention.4} parent=39 // pred_region
        %s548 = smul.u32 4, %s15
        %p549 = scmp.lt.s32.totalorder %s548, 7
        %s550 = scalar_select %p549, %s548, 7
        %s551 = smul.addr %s550, 8
        %s552 = scalar_lea.vmem %s3, %s551
      $region44: #{multi_head_attention.4} parent=39 // pred_fallthru
        _
    $region40: #{multi_head_attention.4} parent=5 // pred_fallthru
      _
  $region6: #{multi_head_attention.4} parent=0 // loop_footer
    %s13 = sadd.s32 1, %s9
  $region7: #{multi_head_attention.4} parent=0 // loop_footer_branch
    %8 = sbr.rel target = $region3
  $region8: #{multi_head_attention.4} parent=0 // loop_exit
    _

</llo_original>
